<compile_context>
chip_gen: v7x
topology: tpu7x:2x2x1
jax: 0.10.0
libtpu: 0.0.40
codegen_flags: <defaults>
</compile_context>

<pallas_src>
import math

import jax
import jax.numpy as jnp
from jax.experimental import pallas as pl
from jax.experimental.pallas import tpu as pltpu

_LANE = 128
_DEFAULT_SAMPLES_PER_STEP = 256 * 1024   # ~2048 rows/step -> ~10.5 MB double-buffered VMEM


def _round_up(n, m):
    return -(-n // m) * m


def layer1_kernel(p_ref, x_ref, y_ref, logp_ref):
    """One batch tile of the flow block, sublane-packed (R, 128) layout.

    p_ref    : SMEM (16,) f32 scalars:
               [w1_00 w1_01 w1_10 w1_11  b1_0 b1_1  a_0 a_1
                w2_00 w2_01 w2_10 w2_11  b2_0 b2_1  const_total  pad]
               const_total = log(1/(2*pi)) + log|det W1| + log|det W2|
    x_ref    : VMEM (2, R, 128)  packed x tile   (feature axis first, batch on sublane+lane)
    y_ref    : VMEM (2, R, 128)  packed y3 tile
    logp_ref : VMEM (R, 128)     packed log-density tile
    """
    w1_00 = p_ref[0];  w1_01 = p_ref[1];  w1_10 = p_ref[2];  w1_11 = p_ref[3]
    b1_0  = p_ref[4];  b1_1  = p_ref[5]
    a0    = p_ref[6];  a1    = p_ref[7]
    w2_00 = p_ref[8];  w2_01 = p_ref[9];  w2_10 = p_ref[10]; w2_11 = p_ref[11]
    b2_0  = p_ref[12]; b2_1  = p_ref[13]
    const_total = p_ref[14]

    x0 = x_ref[0]                     # (R, 128) -- full sublane density
    x1 = x_ref[1]                     # (R, 128)

    # fc1 (LU): y1 = x @ W1^T + b1  ->  4 broadcast FMAs on the VPU (no MXU for a 2x2).
    y1_0 = x0 * w1_00 + x1 * w1_01 + b1_0
    y1_1 = x0 * w1_10 + x1 * w1_11 + b1_1

    # nln (nLayer): y2 = y1 + a * tanh(y1)
    t0 = jnp.tanh(y1_0)
    t1 = jnp.tanh(y1_1)
    y2_0 = y1_0 + a0 * t0
    y2_1 = y1_1 + a1 * t1
    # lJ2 = sum_d log(1 + a_d*(1 - tanh(y1_d)^2))  -- merged into a single log.
    # (assumes a_d > -1, i.e. both factors strictly positive; matches the monotone nLayer)
    lJ2 = jnp.log((1.0 + a0 * (1.0 - t0 * t0)) * (1.0 + a1 * (1.0 - t1 * t1)))

    # fc2 (LU): y3 = y2 @ W2^T + b2
    y3_0 = y2_0 * w2_00 + y2_1 * w2_01 + b2_0
    y3_1 = y2_0 * w2_10 + y2_1 * w2_11 + b2_1

    y_ref[0] = y3_0
    y_ref[1] = y3_1

    # log p = log(1/(2*pi)) - |y3|^2/2 + lJ1 + lJ2 + lJ3   (lJ1+lJ3 folded into const_total)
    logp_ref[...] = const_total - 0.5 * (y3_0 * y3_0 + y3_1 * y3_1) + lJ2


def _pack_params(w1, b1, a, w2, b2):
    """Fold the constant log-Jacobians + Gaussian normalizer; pack 15 scalars into (16,)."""
    ld1 = jnp.log(jnp.abs(w1[0, 0] * w1[1, 1] - w1[0, 1] * w1[1, 0]))
    ld2 = jnp.log(jnp.abs(w2[0, 0] * w2[1, 1] - w2[0, 1] * w2[1, 0]))
    const_total = math.log(1.0 / (2.0 * math.pi)) + ld1 + ld2
    return jnp.concatenate([
        w1.reshape(-1).astype(jnp.float32),
        b1.reshape(-1).astype(jnp.float32),
        a.reshape(-1).astype(jnp.float32),
        w2.reshape(-1).astype(jnp.float32),
        b2.reshape(-1).astype(jnp.float32),
        jnp.reshape(const_total, (1,)).astype(jnp.float32),
        jnp.zeros((1,), jnp.float32),
    ])


def _choose_block_rows(rows, samples_per_step):
    """Pick the per-step row count R (multiple of 8, batch tile = R*128 samples)."""
    r_cap = max(8, (samples_per_step // _LANE) // 8 * 8)
    if 8 < rows <= r_cap:
        # Whole array would fit in one step: split into >=2 steps so both v7x
        # TensorCores (megacore 'parallel' sharding) issue DMAs and do work.
        return max(8, _round_up(-(-rows // 2), 8))
    return min(r_cap, _round_up(rows, 8))


def layer1_forward_packed(x_packed, params, *, block_rows=None,
                          samples_per_step=_DEFAULT_SAMPLES_PER_STEP,
                          vmem_limit_bytes=None):
    """Optimized entry point: x_packed is (2, rows, 128) f32, rows % 8 == 0.

    x_packed[d, r, l] = x[r*128 + l, d].  No host-side transpose/pad traffic; callers
    that keep the whole flow in this layout between layers stay at the kernel's
    ~20 B/sample HBM roofline.  Returns (y_packed (2, rows, 128), logp_packed (rows, 128)).
    """
    D, rows, lane = x_packed.shape
    assert D == 2 and lane == _LANE and rows % 8 == 0

    R = block_rows if block_rows is not None else _choose_block_rows(rows, samples_per_step)
    R = min(R, rows)
    assert R % 8 == 0
    grid = pl.cdiv(rows, R)   # ragged last tile handled by Pallas (masked writeback)

    cp_kwargs = dict(dimension_semantics=("parallel",))
    if vmem_limit_bytes is not None:
        # e.g. when pushing >~400K samples/step on v5e (16 MiB scoped VMEM default).
        cp_kwargs["vmem_limit_bytes"] = vmem_limit_bytes

    y_packed, logp_packed = pl.pallas_call(
        layer1_kernel,
        grid=(grid,),
        in_specs=[
            pl.BlockSpec(memory_space=pltpu.MemorySpace.SMEM),     # params (whole, SMEM)
            pl.BlockSpec((2, R, _LANE), lambda i: (0, i, 0)),      # packed x tile
        ],
        out_specs=(
            pl.BlockSpec((2, R, _LANE), lambda i: (0, i, 0)),      # packed y3 tile
            pl.BlockSpec((R, _LANE), lambda i: (i, 0)),            # packed log p tile
        ),
        out_shape=(jax.ShapeDtypeStruct((2, rows, _LANE), jnp.float32),
                   jax.ShapeDtypeStruct((rows, _LANE), jnp.float32)),
        compiler_params=pltpu.CompilerParams(**cp_kwargs),
    )(params, x_packed)
    return y_packed, logp_packed


def layer1_forward(x, w1, b1, a, w2, b2, *,
                   samples_per_step=_DEFAULT_SAMPLES_PER_STEP,
                   vmem_limit_bytes=None):
    """(N, 2) drop-in wrapper: layout glue + packed kernel. Returns (y3 [N,2], logp [N]).

    The transpose/pad/unpad here is host-side glue for API compatibility with the
    PyTorch module; for best end-to-end bandwidth keep the surrounding flow in the
    packed (2, rows, 128) layout and call layer1_forward_packed directly.
    """
    N, D = x.shape
    assert D == 2

    params = _pack_params(w1, b1, a, w2, b2)

    rows = -(-N // _LANE)
    R = _choose_block_rows(rows, samples_per_step)
    rows_pad = _round_up(max(rows, R), R)
    n_pad = rows_pad * _LANE

    # Feature-major + pad, then a free row-major reshape into the packed layout.
    x_t = jnp.zeros((2, n_pad), jnp.float32).at[:, :N].set(x.T.astype(jnp.float32))
    x_packed = x_t.reshape(2, rows_pad, _LANE)

    y_packed, logp_packed = layer1_forward_packed(
        x_packed, params, block_rows=R, vmem_limit_bytes=vmem_limit_bytes)

    y3 = y_packed.reshape(2, n_pad)[:, :N].T
    logp = logp_packed.reshape(n_pad)[:N]
    return y3, logp


def layer1_reference(x, w1, b1, a, w2, b2):
    """Pure-JAX reference for a sanity check."""
    y1 = x @ w1.T + b1
    lJ1 = jnp.log(jnp.abs(jnp.linalg.det(w1)))
    t = jnp.tanh(y1)
    y2 = y1 + a * t
    lJ2 = jnp.sum(jnp.log(1.0 + a * (1.0 - t * t)), axis=1)
    y3 = y2 @ w2.T + b2
    lJ3 = jnp.log(jnp.abs(jnp.linalg.det(w2)))
    logp = (math.log(1.0 / (2.0 * math.pi))
            - jnp.sum(y3 * y3, axis=1) / 2.0 + lJ1 + lJ2 + lJ3)
    return y3, logp


if __name__ == "__main__":
    key = jax.random.PRNGKey(0)
    kx, k1, k2 = jax.random.split(key, 3)

    # Small but non-trivial: N not a multiple of 128 (exercises padding) and, with the
    # small per-step tile below, a multi-step 1-D grid.
    N, D = 5000, 2
    x = jax.random.normal(kx, (N, D), dtype=jnp.float32)

    # Deterministic parameter init (invertible 2x2 affine maps, a > -1 => monotone nLayer).
    w1 = jnp.eye(D, dtype=jnp.float32) + 0.1 * jax.random.normal(k1, (D, D), dtype=jnp.float32)
    b1 = jnp.array([0.05, -0.03], dtype=jnp.float32)
    a = jnp.array([0.2, 0.3], dtype=jnp.float32)
    w2 = jnp.eye(D, dtype=jnp.float32) + 0.1 * jax.random.normal(k2, (D, D), dtype=jnp.float32)
    b2 = jnp.array([-0.02, 0.04], dtype=jnp.float32)

    # Tiny per-step tile (16 rows = 2048 samples) so the grid takes multiple steps in the
    # test; production use leaves the default (~256K samples/step, ~10.5 MB double-buffered
    # VMEM, safely under the 16 MiB v5e / 32 MiB v6e+v7x scoped-VMEM defaults).
    y3, logp = layer1_forward(x, w1, b1, a, w2, b2, samples_per_step=16 * _LANE)
    jax.block_until_ready((y3, logp))

    y3_ref, logp_ref = layer1_reference(x, w1, b1, a, w2, b2)
    assert jnp.allclose(y3, y3_ref, atol=1e-5, rtol=1e-5)
    assert jnp.allclose(logp, logp_ref, atol=1e-5, rtol=1e-5)

    print("KERNEL_OK")
</pallas_src>

<mosaic_0001>
module attributes {stable_mosaic.version = 11 : i64} {
  func.func @layer1_kernel(%arg0: i32, %arg1: memref<16xf32, #tpu.memory_space<smem>>, %arg2: memref<2x16x128xf32, #tpu.memory_space<vmem>>, %arg3: memref<2x16x128xf32, #tpu.memory_space<vmem>>, %arg4: memref<16x128xf32, #tpu.memory_space<vmem>>) attributes {dimension_semantics = [#tpu.dimension_semantics<parallel>], iteration_bounds = array<i64: 3>, scalar_prefetch = 0 : i64, scratch_operands = 0 : i64, tpu.core_type = #tpu.core_type<tc>, window_params = [{transform_indices = @transform_0, window_bounds = array<i64: 16>}, {transform_indices = @transform_1, window_bounds = array<i64: 2, 16, 128>}, {transform_indices = @transform_2, window_bounds = array<i64: 2, 16, 128>}, {transform_indices = @transform_3, window_bounds = array<i64: 16, 128>}]} {
    %c0 = arith.constant 0 : index
    %0 = memref.load %arg1[%c0] : memref<16xf32, #tpu.memory_space<smem>>
    %c1 = arith.constant 1 : index
    %1 = memref.load %arg1[%c1] : memref<16xf32, #tpu.memory_space<smem>>
    %c2 = arith.constant 2 : index
    %2 = memref.load %arg1[%c2] : memref<16xf32, #tpu.memory_space<smem>>
    %c3 = arith.constant 3 : index
    %3 = memref.load %arg1[%c3] : memref<16xf32, #tpu.memory_space<smem>>
    %c4 = arith.constant 4 : index
    %4 = memref.load %arg1[%c4] : memref<16xf32, #tpu.memory_space<smem>>
    %c5 = arith.constant 5 : index
    %5 = memref.load %arg1[%c5] : memref<16xf32, #tpu.memory_space<smem>>
    %c6 = arith.constant 6 : index
    %6 = memref.load %arg1[%c6] : memref<16xf32, #tpu.memory_space<smem>>
    %c7 = arith.constant 7 : index
    %7 = memref.load %arg1[%c7] : memref<16xf32, #tpu.memory_space<smem>>
    %c8 = arith.constant 8 : index
    %8 = memref.load %arg1[%c8] : memref<16xf32, #tpu.memory_space<smem>>
    %c9 = arith.constant 9 : index
    %9 = memref.load %arg1[%c9] : memref<16xf32, #tpu.memory_space<smem>>
    %c10 = arith.constant 10 : index
    %10 = memref.load %arg1[%c10] : memref<16xf32, #tpu.memory_space<smem>>
    %c11 = arith.constant 11 : index
    %11 = memref.load %arg1[%c11] : memref<16xf32, #tpu.memory_space<smem>>
    %c12 = arith.constant 12 : index
    %12 = memref.load %arg1[%c12] : memref<16xf32, #tpu.memory_space<smem>>
    %c13 = arith.constant 13 : index
    %13 = memref.load %arg1[%c13] : memref<16xf32, #tpu.memory_space<smem>>
    %c14 = arith.constant 14 : index
    %14 = memref.load %arg1[%c14] : memref<16xf32, #tpu.memory_space<smem>>
    %c0_0 = arith.constant 0 : index
    %c0_1 = arith.constant 0 : index
    %c0_2 = arith.constant 0 : index
    %15 = vector.load %arg2[%c0_0, %c0_1, %c0_2] : memref<2x16x128xf32, #tpu.memory_space<vmem>>, vector<1x16x128xf32>
    %16 = vector.shape_cast %15 : vector<1x16x128xf32> to vector<16x128xf32>
    %c1_3 = arith.constant 1 : index
    %c0_4 = arith.constant 0 : index
    %c0_5 = arith.constant 0 : index
    %17 = vector.load %arg2[%c1_3, %c0_4, %c0_5] : memref<2x16x128xf32, #tpu.memory_space<vmem>>, vector<1x16x128xf32>
    %18 = vector.shape_cast %17 : vector<1x16x128xf32> to vector<16x128xf32>
    %19 = vector.broadcast %0 : f32 to vector<16x128xf32>
    %20 = arith.mulf %16, %19 : vector<16x128xf32>
    %21 = vector.broadcast %1 : f32 to vector<16x128xf32>
    %22 = arith.mulf %18, %21 : vector<16x128xf32>
    %23 = arith.addf %20, %22 : vector<16x128xf32>
    %24 = vector.broadcast %4 : f32 to vector<16x128xf32>
    %25 = arith.addf %23, %24 : vector<16x128xf32>
    %26 = vector.broadcast %2 : f32 to vector<16x128xf32>
    %27 = arith.mulf %16, %26 : vector<16x128xf32>
    %28 = vector.broadcast %3 : f32 to vector<16x128xf32>
    %29 = arith.mulf %18, %28 : vector<16x128xf32>
    %30 = arith.addf %27, %29 : vector<16x128xf32>
    %31 = vector.broadcast %5 : f32 to vector<16x128xf32>
    %32 = arith.addf %30, %31 : vector<16x128xf32>
    %33 = math.tanh %25 : vector<16x128xf32>
    %34 = math.tanh %32 : vector<16x128xf32>
    %35 = vector.broadcast %6 : f32 to vector<16x128xf32>
    %36 = arith.mulf %35, %33 : vector<16x128xf32>
    %37 = arith.addf %25, %36 : vector<16x128xf32>
    %38 = vector.broadcast %7 : f32 to vector<16x128xf32>
    %39 = arith.mulf %38, %34 : vector<16x128xf32>
    %40 = arith.addf %32, %39 : vector<16x128xf32>
    %41 = arith.mulf %33, %33 : vector<16x128xf32>
    %cst = arith.constant 1.000000e+00 : f32
    %42 = vector.broadcast %cst : f32 to vector<16x128xf32>
    %43 = arith.subf %42, %41 : vector<16x128xf32>
    %44 = vector.broadcast %6 : f32 to vector<16x128xf32>
    %45 = arith.mulf %44, %43 : vector<16x128xf32>
    %cst_6 = arith.constant 1.000000e+00 : f32
    %46 = vector.broadcast %cst_6 : f32 to vector<16x128xf32>
    %47 = arith.addf %46, %45 : vector<16x128xf32>
    %48 = arith.mulf %34, %34 : vector<16x128xf32>
    %cst_7 = arith.constant 1.000000e+00 : f32
    %49 = vector.broadcast %cst_7 : f32 to vector<16x128xf32>
    %50 = arith.subf %49, %48 : vector<16x128xf32>
    %51 = vector.broadcast %7 : f32 to vector<16x128xf32>
    %52 = arith.mulf %51, %50 : vector<16x128xf32>
    %cst_8 = arith.constant 1.000000e+00 : f32
    %53 = vector.broadcast %cst_8 : f32 to vector<16x128xf32>
    %54 = arith.addf %53, %52 : vector<16x128xf32>
    %55 = arith.mulf %47, %54 : vector<16x128xf32>
    %56 = math.log %55 : vector<16x128xf32>
    %57 = vector.broadcast %8 : f32 to vector<16x128xf32>
    %58 = arith.mulf %37, %57 : vector<16x128xf32>
    %59 = vector.broadcast %9 : f32 to vector<16x128xf32>
    %60 = arith.mulf %40, %59 : vector<16x128xf32>
    %61 = arith.addf %58, %60 : vector<16x128xf32>
    %62 = vector.broadcast %12 : f32 to vector<16x128xf32>
    %63 = arith.addf %61, %62 : vector<16x128xf32>
    %64 = vector.broadcast %10 : f32 to vector<16x128xf32>
    %65 = arith.mulf %37, %64 : vector<16x128xf32>
    %66 = vector.broadcast %11 : f32 to vector<16x128xf32>
    %67 = arith.mulf %40, %66 : vector<16x128xf32>
    %68 = arith.addf %65, %67 : vector<16x128xf32>
    %69 = vector.broadcast %13 : f32 to vector<16x128xf32>
    %70 = arith.addf %68, %69 : vector<16x128xf32>
    %c0_9 = arith.constant 0 : index
    %c0_10 = arith.constant 0 : index
    %c0_11 = arith.constant 0 : index
    %71 = vector.load %arg3[%c0_9, %c0_10, %c0_11] : memref<2x16x128xf32, #tpu.memory_space<vmem>>, vector<1x16x128xf32>
    %72 = vector.shape_cast %71 : vector<1x16x128xf32> to vector<16x128xf32>
    %73 = vector.shape_cast %63 : vector<16x128xf32> to vector<1x16x128xf32>
    tpu.vector_store %arg3[%c0_9, %c0_10, %c0_11], %73 {strides = array<i32>} : memref<2x16x128xf32, #tpu.memory_space<vmem>>, vector<1x16x128xf32>,
    %c1_12 = arith.constant 1 : index
    %c0_13 = arith.constant 0 : index
    %c0_14 = arith.constant 0 : index
    %74 = vector.load %arg3[%c1_12, %c0_13, %c0_14] : memref<2x16x128xf32, #tpu.memory_space<vmem>>, vector<1x16x128xf32>
    %75 = vector.shape_cast %74 : vector<1x16x128xf32> to vector<16x128xf32>
    %76 = vector.shape_cast %70 : vector<16x128xf32> to vector<1x16x128xf32>
    tpu.vector_store %arg3[%c1_12, %c0_13, %c0_14], %76 {strides = array<i32>} : memref<2x16x128xf32, #tpu.memory_space<vmem>>, vector<1x16x128xf32>,
    %77 = arith.mulf %63, %63 : vector<16x128xf32>
    %78 = arith.mulf %70, %70 : vector<16x128xf32>
    %79 = arith.addf %77, %78 : vector<16x128xf32>
    %cst_15 = arith.constant 5.000000e-01 : f32
    %80 = vector.broadcast %cst_15 : f32 to vector<16x128xf32>
    %81 = arith.mulf %80, %79 : vector<16x128xf32>
    %82 = vector.broadcast %14 : f32 to vector<16x128xf32>
    %83 = arith.subf %82, %81 : vector<16x128xf32>
    %84 = arith.addf %83, %56 : vector<16x128xf32>
    %c0_16 = arith.constant 0 : index
    %c0_17 = arith.constant 0 : index
    %85 = vector.load %arg4[%c0_16, %c0_17] : memref<16x128xf32, #tpu.memory_space<vmem>>, vector<16x128xf32>
    tpu.vector_store %arg4[%c0_16, %c0_17], %84 {strides = array<i32>} : memref<16x128xf32, #tpu.memory_space<vmem>>, vector<16x128xf32>,
    return
  }
  func.func @transform_0(%arg0: i32) -> i32 {
    %c0_i32 = arith.constant 0 : i32
    %c0_i32_0 = arith.constant 0 : i32
    return %c0_i32 : i32
  }
  func.func @transform_1(%arg0: i32) -> (i32, i32, i32) {
    %c0_i32 = arith.constant 0 : i32
    %c0_i32_0 = arith.constant 0 : i32
    %c0_i32_1 = arith.constant 0 : i32
    return %c0_i32, %arg0, %c0_i32_0 : i32, i32, i32
  }
  func.func @transform_2(%arg0: i32) -> (i32, i32, i32) {
    %c0_i32 = arith.constant 0 : i32
    %c0_i32_0 = arith.constant 0 : i32
    %c0_i32_1 = arith.constant 0 : i32
    return %c0_i32, %arg0, %c0_i32_0 : i32, i32, i32
  }
  func.func @transform_3(%arg0: i32) -> (i32, i32) {
    %c0_i32 = arith.constant 0 : i32
    %c0_i32_0 = arith.constant 0 : i32
    return %arg0, %c0_i32 : i32, i32
  }
}

</mosaic_0001>

<llo_original>
// kernel: tpu_custom_call.1
$region0: #{tpu_custom_call.1}
  #allocation0 [shape = 'u32[]', space=smem, size = 0x4, offset = 0x4, fixed_abs, tag = 'smem constant byte address 0x4 - core index']
  #allocation1 [shape = 'u32[144,128]{1,0:T(1,128)}', space=vmem, size = 0x12000, scoped, tag = 'internal scratch']
  #allocation10 [shape = 's32[]', space=sflag, size = 0x4, offset = 0, fixed_abs, tag = 'sflag constant byte address 0x0 - dummy sync flag']
  #allocation12 [shape = 's32[]', space=sflag, size = 0x4, offset = 0, fixed_abs, tag = 'sflag constant byte address 0x0 - dummy sync flag']
  %s0 = inlined_call_operand.hbm [shape: f32[16], index: 0, kind: input, shape index: {}]
  %s1 = inlined_call_operand.hbm [shape: f32[2,48,128], index: 1, kind: input, shape index: {}]
  %s2 = inlined_call_operand.hbm [shape: f32[2,48,128], index: 2, kind: output, shape index: {0}]
  %s3 = inlined_call_operand.hbm [shape: f32[48,128], index: 3, kind: output, shape index: {1}]
  %4 = xla_tuple %s2, %s3
  %s5 = sld [smem:[#allocation0]]
  $region57: #{tpu_custom_call.1} parent=0
    _
  %s7 = ssub.s32 1, %s5
  %s8 = scalar_select 0, %s7, %s5
  $region1: #{tpu_custom_call.1} parent=0
    #allocation2 [shape = 'u8[512]{0}', space=smem, size = 0x200, scoped, tag = 'input window, operand 0, single buffered']
    #allocation3 [shape = 's32[2]{0}', space=sflag, size = 0x8, scoped, tag = 'scoped memory for tpu_custom_call.1']
    #allocation4 [shape = 's32[2]{0}', space=sflag, size = 0x8, scoped, tag = 'scoped memory for tpu_custom_call.1']
    #allocation5 [shape = 's32[2]{0}', space=sflag, size = 0x8, scoped, tag = 'scoped memory for tpu_custom_call.1']
    #allocation6 [shape = 'u8[32768]{0}', space=vmem, size = 0x8000, scoped, tag = 'input window, operand 1']
    #allocation7 [shape = 'u8[32768]{0}', space=vmem, size = 0x8000, scoped, tag = 'output window, operand 0']
    #allocation8 [shape = 'u8[16384]{0}', space=vmem, size = 0x4000, scoped, tag = 'output window, operand 1']
    #allocation9 [shape = 's32[2]{0}', space=sflag, size = 0x8, scoped, tag = 'scoped memory for tpu_custom_call.1']
    %9 = vsyncpa [#allocation5], 0
    %10 = vsyncpa [#allocation3], 0
    %s11 = scalar_lea.sflag [#allocation3], 1
    %12 = vsyncpa %s11, 0
    %13 = vsyncpa [#allocation4], 0
    %s14 = scalar_lea.sflag [#allocation4], 1
    %15 = vsyncpa %s14, 0
    %16 = vsyncpa [#allocation9], 0
    %s17 = scalar_lea.sflag [#allocation9], 1
    %18 = vsyncpa %s17, 0
    loop: start=0, step=1, limit=5
    $region2: #{tpu_custom_call.1} parent=1 // loop_pre_header
      _
    $region3: #{tpu_custom_call.1} parent=1 // loop_header
      %s20 = sphi 0, %s24
      %p21 = scmp.ge.s32.totalorder %s20, 5
      %s28 = sphi 0, %s28
      %s30 = sphi 0, %s28
      %s31 = sphi 0, %s30
      %s45 = sphi 0, %s31
      %s51 = sphi 0, %s53
      %s54 = sphi 0, %s51
      %s55 = sphi 0, %s54
      %s71 = sphi 0, %s55
      %s77 = sphi 0, %s79
      %s80 = sphi 0, %s77
      %s81 = sphi 0, %s80
      %s97 = sphi 0, %s81
      %s103 = sphi 0, %s105
      %s106 = sphi 0, %s103
      %s107 = sphi 0, %s106
      %s123 = sphi 0, %s107
    $region4: #{tpu_custom_call.1} parent=1 // loop_header_branch
      %23 = sbr.rel (%p21) target = $region8
    $region5: #{tpu_custom_call.1} parent=1 // loop_body
      %s25 = ssub.s32 %s20, 1
      %s26 = ssub.s32 %s20, 2
      %s27 = sadd.s32 %s20, 1
      %s29 = sadd.s32 %s28, 1
      %p32 = scmp.eq.s32.totalorder %s20, 2
      %p33 = scmp.ne.s32.totalorder %s28, %s30
      %p34 = scmp.eq.s32.totalorder %s20, 0
      %p35 = por %p33, %p34
      %p36 = scmp.ne.s32.totalorder %s28, %s30
      %p37 = scmp.eq.s32.totalorder %s25, 2
      %p38 = por %p36, %p37
      %p39 = scmp.ne.s32.totalorder %s30, %s31
      %p40 = scmp.eq.s32.totalorder %s25, 0
      %p41 = por %p39, %p40
      %p42 = scmp.ne.s32.totalorder %s30, %s31
      %p43 = scmp.eq.s32.totalorder %s26, 2
      %p44 = por %p42, %p43
      %p46 = scmp.ne.s32.totalorder %s31, %s45
      %p47 = scmp.eq.s32.totalorder %s26, 0
      %p48 = por %p46, %p47
      %s49 = ssub.s32 %s20, %s27
      %p50 = scmp.eq.s32.totalorder %s49, 0
      %s52 = sadd.s32 %s51, 1
      %s53 = scalar_select %p50, %s51, %s52
      %p56 = pneg %p50
      %p57 = scmp.eq.s32.totalorder %s20, 2
      %p58 = por %p56, %p57
      %p59 = scmp.ne.s32.totalorder %s51, %s54
      %p60 = scmp.eq.s32.totalorder %s20, 0
      %p61 = por %p59, %p60
      %p62 = scmp.ne.s32.totalorder %s51, %s54
      %p63 = scmp.eq.s32.totalorder %s25, 2
      %p64 = por %p62, %p63
      %p65 = scmp.ne.s32.totalorder %s54, %s55
      %p66 = scmp.eq.s32.totalorder %s25, 0
      %p67 = por %p65, %p66
      %p68 = scmp.ne.s32.totalorder %s54, %s55
      %p69 = scmp.eq.s32.totalorder %s26, 2
      %p70 = por %p68, %p69
      %p72 = scmp.ne.s32.totalorder %s55, %s71
      %p73 = scmp.eq.s32.totalorder %s26, 0
      %p74 = por %p72, %p73
      %s75 = ssub.s32 %s20, %s27
      %p76 = scmp.eq.s32.totalorder %s75, 0
      %s78 = sadd.s32 %s77, 1
      %s79 = scalar_select %p76, %s77, %s78
      %p82 = pneg %p76
      %p83 = scmp.eq.s32.totalorder %s20, 2
      %p84 = por %p82, %p83
      %p85 = scmp.ne.s32.totalorder %s77, %s80
      %p86 = scmp.eq.s32.totalorder %s20, 0
      %p87 = por %p85, %p86
      %p88 = scmp.ne.s32.totalorder %s77, %s80
      %p89 = scmp.eq.s32.totalorder %s25, 2
      %p90 = por %p88, %p89
      %p91 = scmp.ne.s32.totalorder %s80, %s81
      %p92 = scmp.eq.s32.totalorder %s25, 0
      %p93 = por %p91, %p92
      %p94 = scmp.ne.s32.totalorder %s80, %s81
      %p95 = scmp.eq.s32.totalorder %s26, 2
      %p96 = por %p94, %p95
      %p98 = scmp.ne.s32.totalorder %s81, %s97
      %p99 = scmp.eq.s32.totalorder %s26, 0
      %p100 = por %p98, %p99
      %s101 = ssub.s32 %s20, %s27
      %p102 = scmp.eq.s32.totalorder %s101, 0
      %s104 = sadd.s32 %s103, 1
      %s105 = scalar_select %p102, %s103, %s104
      %p108 = pneg %p102
      %p109 = scmp.eq.s32.totalorder %s20, 2
      %p110 = por %p108, %p109
      %p111 = scmp.ne.s32.totalorder %s103, %s106
      %p112 = scmp.eq.s32.totalorder %s20, 0
      %p113 = por %p111, %p112
      %p114 = scmp.ne.s32.totalorder %s103, %s106
      %p115 = scmp.eq.s32.totalorder %s25, 2
      %p116 = por %p114, %p115
      %p117 = scmp.ne.s32.totalorder %s106, %s107
      %p118 = scmp.eq.s32.totalorder %s25, 0
      %p119 = por %p117, %p118
      %p120 = scmp.ne.s32.totalorder %s106, %s107
      %p121 = scmp.eq.s32.totalorder %s26, 2
      %p122 = por %p120, %p121
      %p124 = scmp.ne.s32.totalorder %s107, %s123
      %p125 = scmp.eq.s32.totalorder %s26, 0
      %p126 = por %p124, %p125
      %p127 = scmp.le.s32.totalorder 1, %s20
      %p128 = scmp.lt.s32.totalorder %s20, 4
      %p129 = pnand %p127, %p128
      %p130 = pneg %p129
      // Predicated region
      $region9: #{tpu_custom_call.1} parent=5 // pred_check
        _
      $region10: #{tpu_custom_call.1} parent=5 // pred_check_branch
        %132 = sbr.rel (%p129) target = $region12
      $region11: #{tpu_custom_call.1} parent=5 // pred_region
        %s133 = ssub.s32 %s20, 1
        // Predicated region
        $region13: #{tpu_custom_call.1} parent=11 // pred_check
          %p134 = pneg %p41
        $region14: #{tpu_custom_call.1} parent=11 // pred_check_branch
          %136 = sbr.rel (%p134) target = $region16
        $region15: #{tpu_custom_call.1} parent=11 // pred_region
          %s138 = ssub.s32 16, 16
          %139 = vsyncadd [#allocation5], %s138
          %142 = dma.hbm_to_smem %s0, 16, [#allocation2], [#allocation5]
        $region16: #{tpu_custom_call.1} parent=11 // pred_fallthru
          _
      $region12: #{tpu_custom_call.1} parent=5 // pred_fallthru
        _
      %p143 = scmp.lt.s32.totalorder %s20, 3
      // Predicated region
      $region17: #{tpu_custom_call.1} parent=5 // pred_check
        %p144 = pneg %p143
      $region18: #{tpu_custom_call.1} parent=5 // pred_check_branch
        %146 = sbr.rel (%p144) target = $region20
      $region19: #{tpu_custom_call.1} parent=5 // pred_region
        // Predicated region
        $region21: #{tpu_custom_call.1} parent=19 // pred_check
          %p147 = pneg %p61
        $region22: #{tpu_custom_call.1} parent=19 // pred_check_branch
          %149 = sbr.rel (%p147) target = $region24
        $region23: #{tpu_custom_call.1} parent=19 // pred_region
          #allocation11 [shape = 'u32[6]{0}', space=smem, size = 0x18, scoped, tag = 'DMA stride descriptor']
          %s150 = sand.u32 %s51, 1
          %s151 = scalar_lea.sflag [#allocation3], %s150
          %s152 = sand.u32 %s51, 1
          %s153 = smul.addr %s152, 32
          %s154 = scalar_lea.vmem [#allocation6], %s153
          %s155 = smul.u32 2, %s20
          %s157 = ssub.s32 512, 512
          %158 = vsyncadd %s151, %s157
          %s159 = smul.addr %s155, 128
          %s160 = scalar_lea.hbm %s1, %s159
          %s162 = sshll.u32 1, 14
          %s163 = sxor.u32 4294967295, %s162
          %s165 = sld [smem:[#allocation0]]
          %s166 = sadd.s32 2, %s165
          %s168 = sshll.u32 7, 26
          %s169 = sxor.u32 4294967295, %s168
          %s170 = sand.u32 0, %s169
          %s171 = sshll.u32 %s166, 26
          %s172 = sor.u32 %s170, %s171
          %s173 = sshll.u32 %s154, 4
          %s174 = int_to_ptr.vmem [resolvable:$true] %s173
          %180 = sst [smem:[#allocation11]] 768
          %s181 = scalar_lea.smem [#allocation11], 1
          %182 = sst [smem:[%s181]] 256
          %s183 = scalar_lea.smem [#allocation11], 2
          %184 = sst [smem:[%s183]] 2
          %s185 = scalar_lea.smem [#allocation11], 3
          %186 = sst [smem:[%s185]] 128
          %s187 = scalar_lea.smem [#allocation11], 4
          %188 = sst [smem:[%s187]] 128
          %s189 = scalar_lea.smem [#allocation11], 5
          %190 = sst [smem:[%s189]] 8
          %192 = dma.general %s160, 512, %s174, %s151, [#allocation10], [#allocation11], %s172, 0
        $region24: #{tpu_custom_call.1} parent=19 // pred_fallthru
          _
      $region20: #{tpu_custom_call.1} parent=5 // pred_fallthru
        _
      %p193 = scmp.le.s32.totalorder 1, %s20
      %p194 = scmp.lt.s32.totalorder %s20, 4
      %p195 = pnand %p193, %p194
      %p196 = pneg %p195
      // Predicated region
      $region25: #{tpu_custom_call.1} parent=5 // pred_check
        _
      $region26: #{tpu_custom_call.1} parent=5 // pred_check_branch
        %198 = sbr.rel (%p195) target = $region28
      $region27: #{tpu_custom_call.1} parent=5 // pred_region
        %s199 = ssub.s32 %s20, 1
        // Predicated region
        $region29: #{tpu_custom_call.1} parent=27 // pred_check
          %p200 = pneg %p41
        $region30: #{tpu_custom_call.1} parent=27 // pred_check_branch
          %202 = sbr.rel (%p200) target = $region32
        $region31: #{tpu_custom_call.1} parent=27 // pred_region
          %203 = dma.done [#allocation5], 16
        $region32: #{tpu_custom_call.1} parent=27 // pred_fallthru
          _
        %s204 = sand.u32 %s54, 1
        %s205 = scalar_lea.sflag [#allocation3], %s204
        %s206 = sand.u32 %s54, 1
        %s207 = smul.addr %s206, 32
        %s208 = scalar_lea.vmem [#allocation6], %s207
        // Predicated region
        $region33: #{tpu_custom_call.1} parent=27 // pred_check
          %p209 = pneg %p67
        $region34: #{tpu_custom_call.1} parent=27 // pred_check_branch
          %211 = sbr.rel (%p209) target = $region36
        $region35: #{tpu_custom_call.1} parent=27 // pred_region
          %212 = dma.done %s205, 512
        $region36: #{tpu_custom_call.1} parent=27 // pred_fallthru
          _
        %213 = sfence
        %p214 = pneg %p41
        %p215 = pneg %p38
        %s216 = sand.u32 %s54, 1
        %s217 = scalar_lea.sflag [#allocation3], %s216
        %s218 = sand.u32 %s54, 1
        %s219 = smul.addr %s218, 32
        %s220 = scalar_lea.vmem [#allocation6], %s219
        %p221 = pneg %p67
        %p222 = pneg %p64
        %p223 = pneg %p93
        %p224 = pneg %p90
        %s225 = sand.u32 %s80, 1
        %s226 = scalar_lea.sflag [#allocation4], %s225
        %s227 = sand.u32 %s80, 1
        %s228 = smul.addr %s227, 32
        %s229 = scalar_lea.vmem [#allocation7], %s228
        %p230 = pneg %p119
        %p231 = pneg %p116
        %s232 = sand.u32 %s106, 1
        %s233 = scalar_lea.sflag [#allocation9], %s232
        %s234 = sand.u32 %s106, 1
        %s235 = smul.addr %s234, 16
        %s236 = scalar_lea.vmem [#allocation8], %s235
        %s237 = smul.u32 2, %s25
        %s238 = smul.u32 2, %s25
        %s239 = smul.u32 2, %s25
        %s240 = sld [smem:[#allocation2]]
        %s241 = sld [smem:[#allocation2 + $0x1]]
        %s242 = sld [smem:[#allocation2 + $0x2]]
        %s243 = sld [smem:[#allocation2 + $0x3]]
        %s244 = sld [smem:[#allocation2 + $0x4]]
        %s245 = sld [smem:[#allocation2 + $0x5]]
        %s246 = sld [smem:[#allocation2 + $0x6]]
        %s247 = sld [smem:[#allocation2 + $0x7]]
        %s248 = sld [smem:[#allocation2 + $0x8]]
        %s249 = sld [smem:[#allocation2 + $0x9]]
        %s250 = sld [smem:[#allocation2 + $0xa]]
        %s251 = sld [smem:[#allocation2 + $0xb]]
        %s252 = sld [smem:[#allocation2 + $0xc]]
        %s253 = sld [smem:[#allocation2 + $0xd]]
        %s254 = sld [smem:[#allocation2 + $0xe]]
        %v255 = vld [vmem:[%s208] sm:$0xff]
        %v256 = vld [vmem:[%s208 + $0x8] sm:$0xff]
        %s257 = scalar_lea.vmem %s208, 16 [#allocation6]
        %v258 = vld [vmem:[%s257] sm:$0xff]
        %v259 = vld [vmem:[%s257 + $0x8] sm:$0xff]
        %v260 = vstv %s240
        %v261 = vmul.f32 %v255, %v260
        %v262 = vmul.f32 %v256, %v260
        %v263 = vstv %s241
        %v264 = vmul.f32 %v258, %v263
        %v265 = vmul.f32 %v259, %v263
        %v266 = vadd.f32 %v261, %v264
        %v267 = vadd.f32 %v262, %v265
        %v268 = vstv %s244
        %v269 = vadd.f32 %v266, %v268
        %v270 = vadd.f32 %v267, %v268
        %v271 = vstv %s242
        %v272 = vmul.f32 %v255, %v271
        %v273 = vmul.f32 %v256, %v271
        %v274 = vstv %s243
        %v275 = vmul.f32 %v258, %v274
        %v276 = vmul.f32 %v259, %v274
        %v277 = vadd.f32 %v272, %v275
        %v278 = vadd.f32 %v273, %v276
        %v279 = vstv %s245
        %v280 = vadd.f32 %v277, %v279
        %v281 = vadd.f32 %v278, %v279
        %v282 = vtanh.pop %v269
        %v283 = vtanh.pop %v270
        %v284 = vtanh.pop %v280
        %v285 = vtanh.pop %v281
        %v286 = vstv %s246
        %v287 = vmul.f32 %v286, %v282
        %v288 = vmul.f32 %v286, %v283
        %v289 = vadd.f32 %v269, %v287
        %v290 = vadd.f32 %v270, %v288
        %v291 = vstv %s247
        %v292 = vmul.f32 %v291, %v284
        %v293 = vmul.f32 %v291, %v285
        %v294 = vadd.f32 %v280, %v292
        %v295 = vadd.f32 %v281, %v293
        %v296 = vmul.f32 %v282, %v282
        %v297 = vmul.f32 %v283, %v283
        %v298 = vsub.f32 1.0, %v296
        %v299 = vsub.f32 1.0, %v297
        %v300 = vmul.f32 %v286, %v298
        %v301 = vmul.f32 %v286, %v299
        %v302 = vadd.f32 %v300, 1.0
        %v303 = vadd.f32 %v301, 1.0
        %v304 = vmul.f32 %v284, %v284
        %v305 = vmul.f32 %v285, %v285
        %v306 = vsub.f32 1.0, %v304
        %v307 = vsub.f32 1.0, %v305
        %v308 = vmul.f32 %v291, %v306
        %v309 = vmul.f32 %v291, %v307
        %v310 = vadd.f32 %v308, 1.0
        %v311 = vadd.f32 %v309, 1.0
        %v312 = vmul.f32 %v302, %v310
        %v313 = vmul.f32 %v303, %v311
        %v314 = vlog2.pop %v312
        %v315 = vmul.f32 %v314, 0.6931472
        %v316 = vlog2.pop %v313
        %v317 = vmul.f32 %v316, 0.6931472
        %v318 = vstv %s248
        %v319 = vmul.f32 %v289, %v318
        %v320 = vmul.f32 %v290, %v318
        %v321 = vstv %s249
        %v322 = vmul.f32 %v294, %v321
        %v323 = vmul.f32 %v295, %v321
        %v324 = vadd.f32 %v319, %v322
        %v325 = vadd.f32 %v320, %v323
        %v326 = vstv %s252
        %v327 = vadd.f32 %v324, %v326
        %v328 = vadd.f32 %v325, %v326
        %v329 = vstv %s250
        %v330 = vmul.f32 %v289, %v329
        %v331 = vmul.f32 %v290, %v329
        %v332 = vstv %s251
        %v333 = vmul.f32 %v294, %v332
        %v334 = vmul.f32 %v295, %v332
        %v335 = vadd.f32 %v330, %v333
        %v336 = vadd.f32 %v331, %v334
        %v337 = vstv %s253
        %v338 = vadd.f32 %v335, %v337
        %v339 = vadd.f32 %v336, %v337
        %340 = vst [vmem:[%s229] sm:$0xff] %v327
        %341 = vst [vmem:[%s229 + $0x8] sm:$0xff] %v328
        %s342 = scalar_lea.vmem %s229, 16 [#allocation7]
        %343 = vst [vmem:[%s342] sm:$0xff] %v338
        %344 = vst [vmem:[%s342 + $0x8] sm:$0xff] %v339
        %v345 = vmul.f32 %v327, %v327
        %v346 = vmul.f32 %v328, %v328
        %v347 = vmul.f32 %v338, %v338
        %v348 = vmul.f32 %v339, %v339
        %v349 = vadd.f32 %v345, %v347
        %v350 = vadd.f32 %v346, %v348
        %v351 = vmul.f32 %v349, 0.5
        %v352 = vmul.f32 %v350, 0.5
        %v353 = vstv %s254
        %v354 = vsub.f32 %v353, %v351
        %v355 = vsub.f32 %v353, %v352
        %v356 = vadd.f32 %v354, %v315
        %v357 = vadd.f32 %v355, %v317
        %358 = vst [vmem:[%s236] sm:$0xff] %v356
        %359 = vst [vmem:[%s236 + $0x8] sm:$0xff] %v357
        %s360 = sand.u32 %s80, 1
        %s361 = scalar_lea.sflag [#allocation4], %s360
        %s362 = sand.u32 %s80, 1
        %s363 = smul.addr %s362, 32
        %s364 = scalar_lea.vmem [#allocation7], %s363
        %s365 = sand.u32 %s106, 1
        %s366 = scalar_lea.sflag [#allocation9], %s365
        %s367 = sand.u32 %s106, 1
        %s368 = smul.addr %s367, 16
        %s369 = scalar_lea.vmem [#allocation8], %s368
        // Predicated region
        $region37: #{tpu_custom_call.1} parent=27 // pred_check
          %p370 = pneg %p90
        $region38: #{tpu_custom_call.1} parent=27 // pred_check_branch
          %372 = sbr.rel (%p370) target = $region40
        $region39: #{tpu_custom_call.1} parent=27 // pred_region
          #allocation13 [shape = 'u32[6]{0}', space=smem, size = 0x18, scoped, tag = 'DMA stride descriptor']
          %s373 = smul.u32 2, %s25
          %s375 = ssub.s32 512, 512
          %376 = vsyncadd %s361, %s375
          %s377 = smul.addr %s373, 128
          %s378 = scalar_lea.hbm %s2, %s377
          %s380 = sshll.u32 1, 14
          %s381 = sxor.u32 4294967295, %s380
          %s384 = sshll.u32 7, 18
          %s385 = sxor.u32 4294967295, %s384
          %s386 = sand.u32 0, %s385
          %s388 = sor.u32 %s386, 0
          %s390 = sshll.u32 3, 24
          %s391 = sxor.u32 4294967295, %s390
          %s392 = sand.u32 %s388, %s391
          %s394 = sor.u32 %s392, 0
          %s395 = sshll.u32 %s364, 4
          %s396 = int_to_ptr.vmem [resolvable:$true] %s395
          %402 = sst [smem:[#allocation13]] 256
          %s403 = scalar_lea.smem [#allocation13], 1
          %404 = sst [smem:[%s403]] 768
          %s405 = scalar_lea.smem [#allocation13], 2
          %406 = sst [smem:[%s405]] 2
          %s407 = scalar_lea.smem [#allocation13], 3
          %408 = sst [smem:[%s407]] 128
          %s409 = scalar_lea.smem [#allocation13], 4
          %410 = sst [smem:[%s409]] 128
          %s411 = scalar_lea.smem [#allocation13], 5
          %412 = sst [smem:[%s411]] 8
          %414 = dma.general %s396, 512, %s378, %s361, [#allocation12], [#allocation13], %s394, 0
        $region40: #{tpu_custom_call.1} parent=27 // pred_fallthru
          _
        // Predicated region
        $region41: #{tpu_custom_call.1} parent=27 // pred_check
          %p415 = pneg %p116
        $region42: #{tpu_custom_call.1} parent=27 // pred_check_branch
          %417 = sbr.rel (%p415) target = $region44
        $region43: #{tpu_custom_call.1} parent=27 // pred_region
          %s418 = smul.u32 2, %s25
          %s420 = ssub.s32 256, 256
          %421 = vsyncadd %s366, %s420
          %s422 = smul.addr %s418, 128
          %s423 = scalar_lea.hbm %s3, %s422
          %s424 = sshll.u32 %s369, 4
          %s425 = int_to_ptr.vmem [resolvable:$true] %s424
          %430 = dma.vmem_to_hbm [thread:$0]  %s425, 256, %s423, %s366, 128, 128, 8
        $region44: #{tpu_custom_call.1} parent=27 // pred_fallthru
          _
      $region28: #{tpu_custom_call.1} parent=5 // pred_fallthru
        _
      %p431 = scmp.le.s32.totalorder 2, %s20
      // Predicated region
      $region45: #{tpu_custom_call.1} parent=5 // pred_check
        %p432 = pneg %p431
      $region46: #{tpu_custom_call.1} parent=5 // pred_check_branch
        %434 = sbr.rel (%p432) target = $region48
      $region47: #{tpu_custom_call.1} parent=5 // pred_region
        %s435 = ssub.s32 %s20, 2
        // Predicated region
        $region49: #{tpu_custom_call.1} parent=47 // pred_check
          %p436 = pneg %p96
        $region50: #{tpu_custom_call.1} parent=47 // pred_check_branch
          %438 = sbr.rel (%p436) target = $region52
        $region51: #{tpu_custom_call.1} parent=47 // pred_region
          %s439 = sand.u32 %s81, 1
          %s440 = scalar_lea.sflag [#allocation4], %s439
          %s441 = sand.u32 %s81, 1
          %s442 = smul.addr %s441, 32
          %s443 = scalar_lea.vmem [#allocation7], %s442
          %444 = dma.done %s440, 512
        $region52: #{tpu_custom_call.1} parent=47 // pred_fallthru
          _
        // Predicated region
        $region53: #{tpu_custom_call.1} parent=47 // pred_check
          %p445 = pneg %p122
        $region54: #{tpu_custom_call.1} parent=47 // pred_check_branch
          %447 = sbr.rel (%p445) target = $region56
        $region55: #{tpu_custom_call.1} parent=47 // pred_region
          %s448 = sand.u32 %s107, 1
          %s449 = scalar_lea.sflag [#allocation9], %s448
          %s450 = sand.u32 %s107, 1
          %s451 = smul.addr %s450, 16
          %s452 = scalar_lea.vmem [#allocation8], %s451
          %453 = dma.done %s449, 256
        $region56: #{tpu_custom_call.1} parent=47 // pred_fallthru
          _
      $region48: #{tpu_custom_call.1} parent=5 // pred_fallthru
        _
    $region6: #{tpu_custom_call.1} parent=1 // loop_footer
      %s24 = sadd.s32 1, %s20
    $region7: #{tpu_custom_call.1} parent=1 // loop_footer_branch
      %19 = sbr.rel target = $region3
    $region8: #{tpu_custom_call.1} parent=1 // loop_exit
      _
    %454 = vsyncpa [#allocation3], 1
    %s455 = scalar_lea.sflag [#allocation3], 1
    %456 = vsyncpa %s455, 1
    %457 = vsyncpa [#allocation4], 1
    %s458 = scalar_lea.sflag [#allocation4], 1
    %459 = vsyncpa %s458, 1
    %460 = vsyncpa [#allocation9], 1
    %s461 = scalar_lea.sflag [#allocation9], 1
    %462 = vsyncpa %s461, 1
    %463 = vsyncpa [#allocation5], 1
    %s464 = scalar_lea.sflag [#allocation5], 1
    %465 = vsyncpa %s464, 1

</llo_original>
